<compile_context>
chip_gen: v6e
topology: v6e:2x2x1
jax: 0.10.0
libtpu: 0.0.40
codegen_flags: <defaults>
</compile_context>

<pallas_src>
import jax
import jax.numpy as jnp
from jax import lax
from jax.experimental import pallas as pl
from jax.experimental.pallas import tpu as pltpu  # noqa: F401  (TPU backend)


def conv1x1_kernel(x_ref, w_ref, b_ref, o_ref):
    # x_ref: (M, K)    activations, K (=Cin) on the lane axis
    # w_ref: (Cout, K) native PyTorch weight layout, K on the lane axis
    # b_ref: (1, Cout)
    # o_ref: (M, Cout)
    # Contract both operands' last axes on the MXU, accumulate in f32.
    acc = lax.dot_general(
        x_ref[...], w_ref[...],
        dimension_numbers=(((1,), (1,)), ((), ())),
        preferred_element_type=jnp.float32,
    )
    o_ref[...] = (acc + b_ref[...]).astype(o_ref.dtype)


def conv1x1(x_nchw, weight, bias):
    """1x1 conv, stride 1, no padding.

    x_nchw: (N, Cin, H, W)
    weight: (Cout, Cin, 1, 1)   (PyTorch layout — used as-is, no transpose)
    bias:   (Cout,)
    returns (N, Cout, H, W)
    """
    N, Cin, H, W = x_nchw.shape
    Cout = weight.shape[0]

    # With H == W == 1 the NCHW<->NHWC permutes are degenerate: express them
    # as pure reshapes so no copy can materialize around the kernel.
    if H == 1 and W == 1:
        x2d = x_nchw.reshape(N, Cin)
    else:
        x2d = jnp.transpose(x_nchw, (0, 2, 3, 1)).reshape(N * H * W, Cin)

    w2d = weight.reshape(Cout, Cin)   # native (96, 2304) — lane-dense K
    b2d = bias.reshape(1, Cout)       # (1, 96)

    M, K = x2d.shape
    itemsize = jnp.dtype(x2d.dtype).itemsize

    cost = pl.CostEstimate(
        flops=2 * M * K * Cout,
        transcendentals=0,
        bytes_accessed=(M * K + Cout * K + Cout + M * Cout) * itemsize,
    )

    out2d = pl.pallas_call(
        conv1x1_kernel,
        out_shape=jax.ShapeDtypeStruct((M, Cout), x2d.dtype),
        # Whole-array blocks, single grid point: everything (~0.9 MiB of
        # weights) comfortably fits in VMEM; nothing to pipeline against.
        in_specs=[
            pl.BlockSpec((M, K), lambda: (0, 0)),
            pl.BlockSpec((Cout, K), lambda: (0, 0)),
            pl.BlockSpec((1, Cout), lambda: (0, 0)),
        ],
        out_specs=pl.BlockSpec((M, Cout), lambda: (0, 0)),
        grid=(),
        cost_estimate=cost,
    )(x2d, w2d, b2d)

    if H == 1 and W == 1:
        return out2d.reshape(N, Cout, 1, 1)
    return jnp.transpose(out2d.reshape(N, H, W, Cout), (0, 3, 1, 2))


if __name__ == "__main__":
    key = jax.random.PRNGKey(0)
    k_x, k_w, k_b = jax.random.split(key, 3)

    N, Cin, H, W = 1, 2304, 1, 1
    Cout = 96

    # Deterministic synthetic parameters (shapes match Conv2d(2304, 96, 1)).
    x = jax.random.normal(k_x, (N, Cin, H, W), dtype=jnp.float32)
    bound = 1.0 / (Cin ** 0.5)  # mimic PyTorch default uniform bound
    weight = jax.random.uniform(k_w, (Cout, Cin, 1, 1), dtype=jnp.float32,
                                minval=-bound, maxval=bound)
    bias = jax.random.uniform(k_b, (Cout,), dtype=jnp.float32,
                              minval=-bound, maxval=bound)

    out = conv1x1(x, weight, bias)
    out = jax.block_until_ready(out)

    # Reference check against plain JAX (same math as the PyTorch 1x1 conv).
    ref = (x.reshape(N, Cin) @ weight.reshape(Cout, Cin).T + bias).reshape(
        N, Cout, H, W)
    assert out.shape == (N, Cout, H, W)
    assert jnp.allclose(out, ref, atol=1e-4, rtol=1e-4)

    print("KERNEL_OK")
</pallas_src>

<mosaic_0001>
module attributes {stable_mosaic.version = 11 : i64} {
  func.func @conv1x1_kernel(%arg0: memref<1x2304xf32, #tpu.memory_space<vmem>>, %arg1: memref<96x2304xf32, #tpu.memory_space<vmem>>, %arg2: memref<1x96xf32, #tpu.memory_space<vmem>>, %arg3: memref<1x96xf32, #tpu.memory_space<vmem>>) attributes {dimension_semantics = [], scalar_prefetch = 0 : i64, scratch_operands = 0 : i64, tpu.core_type = #tpu.core_type<tc>} {
    %c0 = arith.constant 0 : index
    %c0_0 = arith.constant 0 : index
    %0 = vector.load %arg0[%c0, %c0_0] : memref<1x2304xf32, #tpu.memory_space<vmem>>, vector<1x2304xf32>
    %c0_1 = arith.constant 0 : index
    %c0_2 = arith.constant 0 : index
    %1 = vector.load %arg1[%c0_1, %c0_2] : memref<96x2304xf32, #tpu.memory_space<vmem>>, vector<96x2304xf32>
    %cst = arith.constant dense<0.000000e+00> : vector<1x96xf32>
    %2 = tpu.matmul %0, %1, %cst {dimension_numbers = #tpu.dot_dimension_numbers<[1], [1], [0], [0], [0, 0, 1, 0], [], []>} : vector<1x2304xf32>, vector<96x2304xf32>, vector<1x96xf32> -> vector<1x96xf32>
    %c0_3 = arith.constant 0 : index
    %c0_4 = arith.constant 0 : index
    %3 = vector.load %arg2[%c0_3, %c0_4] : memref<1x96xf32, #tpu.memory_space<vmem>>, vector<1x96xf32>
    %4 = arith.addf %2, %3 : vector<1x96xf32>
    %c0_5 = arith.constant 0 : index
    %c0_6 = arith.constant 0 : index
    %5 = vector.load %arg3[%c0_5, %c0_6] : memref<1x96xf32, #tpu.memory_space<vmem>>, vector<1x96xf32>
    tpu.vector_store %arg3[%c0_5, %c0_6], %4 {strides = array<i32>} : memref<1x96xf32, #tpu.memory_space<vmem>>, vector<1x96xf32>,
    return
  }
}

</mosaic_0001>

<llo_original>
// kernel: tpu_custom_call.1
$region0: #{tpu_custom_call.1}
  #allocation0 [shape = 'u32[]', space=smem, size = 0x4, offset = 0x4, fixed_abs, tag = 'smem constant byte address 0x4 - core index']
  #allocation1 [shape = 'u32[144,128]{1,0:T(1,128)}', space=vmem, size = 0x12000, scoped, tag = 'internal scratch']
  %s0 = inlined_call_operand.hbm [shape: f32[1,2304], index: 0, kind: input, shape index: {}]
  %s1 = inlined_call_operand.hbm [shape: f32[96,2304], index: 1, kind: input, shape index: {}]
  %s2 = inlined_call_operand.vmem [shape: f32[1,96], index: 2, kind: input, shape index: {}]
  %s3 = inlined_call_operand.hbm [shape: f32[1,96], index: 3, kind: output, shape index: {}]
  %s4 = sld [smem:[#allocation0]]
  $region30: #{tpu_custom_call.1} parent=0
    _
  %s6 = ssub.s32 1, %s4
  %s7 = scalar_select 0, %s6, %s4
  $region1: #{tpu_custom_call.1} parent=0
    #allocation2 [shape = 'u8[9216]{0}', space=vmem, size = 0x2400, scoped, tag = 'input window, operand 0, single buffered']
    #allocation3 [shape = 's32[1]{0}', space=sflag, size = 0x4, scoped, tag = 'scoped memory for tpu_custom_call.1']
    #allocation4 [shape = 's32[1]{0}', space=sflag, size = 0x4, scoped, tag = 'scoped memory for tpu_custom_call.1']
    #allocation5 [shape = 'u8[884736]{0}', space=vmem, size = 0xd8000, scoped, tag = 'input window, operand 1, single buffered']
    #allocation6 [shape = 's32[1]{0}', space=sflag, size = 0x4, scoped, tag = 'scoped memory for tpu_custom_call.1']
    #allocation7 [shape = 'u8[512]{0}', space=vmem, size = 0x400, scoped, tag = 'output window, operand 0, single buffered']
    %8 = vsyncpa [#allocation3], 0
    %9 = vsyncpa [#allocation6], 0
    %10 = vsyncpa [#allocation4], 0
    // Predicated region
    $region2: #{tpu_custom_call.1} parent=1 // pred_check
      _
    $region3: #{tpu_custom_call.1} parent=1 // pred_check_branch
      %12 = sbr.rel (0) target = $region5
    $region4: #{tpu_custom_call.1} parent=1 // pred_region
      %s14 = ssub.s32 288, 288
      %15 = vsyncadd [#allocation3], %s14
      %s17 = sshll.u32 [#allocation2], 4
      %s18 = int_to_ptr.vmem [resolvable:$true] %s17
      %20 = dma.hbm_to_vmem [thread:$0]  %s0, 288, %s18, [#allocation3]
    $region5: #{tpu_custom_call.1} parent=1 // pred_fallthru
      _
    // Predicated region
    $region6: #{tpu_custom_call.1} parent=1 // pred_check
      _
    $region7: #{tpu_custom_call.1} parent=1 // pred_check_branch
      %22 = sbr.rel (0) target = $region9
    $region8: #{tpu_custom_call.1} parent=1 // pred_region
      %s24 = ssub.s32 27648, 27648
      %25 = vsyncadd [#allocation6], %s24
      %s26 = sshll.u32 [#allocation5], 4
      %s27 = int_to_ptr.vmem [resolvable:$true] %s26
      %32 = dma.hbm_to_vmem [thread:$0]  %s1, 27648, %s27, [#allocation6], 2304, 2304, 144
    $region9: #{tpu_custom_call.1} parent=1 // pred_fallthru
      _
    // Predicated region
    $region10: #{tpu_custom_call.1} parent=1 // pred_check
      _
    $region11: #{tpu_custom_call.1} parent=1 // pred_check_branch
      %34 = sbr.rel (0) target = $region13
    $region12: #{tpu_custom_call.1} parent=1 // pred_region
      _
    $region13: #{tpu_custom_call.1} parent=1 // pred_fallthru
      _
    // Predicated region
    $region14: #{tpu_custom_call.1} parent=1 // pred_check
      _
    $region15: #{tpu_custom_call.1} parent=1 // pred_check_branch
      %36 = sbr.rel (0) target = $region17
    $region16: #{tpu_custom_call.1} parent=1 // pred_region
      %37 = dma.done [#allocation3], 288
    $region17: #{tpu_custom_call.1} parent=1 // pred_fallthru
      _
    // Predicated region
    $region18: #{tpu_custom_call.1} parent=1 // pred_check
      _
    $region19: #{tpu_custom_call.1} parent=1 // pred_check_branch
      %39 = sbr.rel (0) target = $region21
    $region20: #{tpu_custom_call.1} parent=1 // pred_region
      %40 = dma.done [#allocation6], 27648
    $region21: #{tpu_custom_call.1} parent=1 // pred_fallthru
      _
    %v41 = vld [vmem:[#allocation2] sm:$0xff]
    %v42 = vld [vmem:[#allocation2 + $0x8] sm:$0xff]
    %v43 = vld [vmem:[#allocation2 + $0x10] sm:$0x3]
    %v44 = vld [vmem:[#allocation5] sm:$0xff]
    %v45 = vld [vmem:[#allocation5 + $0x8] sm:$0xff]
    %v46 = vld [vmem:[#allocation5 + $0x10] sm:$0xff]
    %v47 = vld [vmem:[#allocation5 + $0x18] sm:$0xff]
    %v48 = vld [vmem:[#allocation5 + $0x20] sm:$0xff]
    %v49 = vld [vmem:[#allocation5 + $0x28] sm:$0xff]
    %v50 = vld [vmem:[#allocation5 + $0x30] sm:$0xff]
    %v51 = vld [vmem:[#allocation5 + $0x38] sm:$0xff]
    %v52 = vld [vmem:[#allocation5 + $0x40] sm:$0xff]
    %v53 = vld [vmem:[#allocation5 + $0x48] sm:$0xff]
    %v54 = vld [vmem:[#allocation5 + $0x50] sm:$0xff]
    %v55 = vld [vmem:[#allocation5 + $0x58] sm:$0xff]
    %v56 = vld [vmem:[#allocation5 + $0x60] sm:$0xff]
    %v57 = vld [vmem:[#allocation5 + $0x68] sm:$0xff]
    %v58 = vld [vmem:[#allocation5 + $0x70] sm:$0xff]
    %v59 = vld [vmem:[#allocation5 + $0x78] sm:$0xff]
    %v60 = vld [vmem:[#allocation5 + $0x80] sm:$0xff]
    %v61 = vld [vmem:[#allocation5 + $0x88] sm:$0xff]
    %v62 = vld [vmem:[#allocation5 + $0x90] sm:$0xff]
    %v63 = vld [vmem:[#allocation5 + $0x98] sm:$0xff]
    %v64 = vld [vmem:[#allocation5 + $0xa0] sm:$0xff]
    %v65 = vld [vmem:[#allocation5 + $0xa8] sm:$0xff]
    %v66 = vld [vmem:[#allocation5 + $0xb0] sm:$0xff]
    %v67 = vld [vmem:[#allocation5 + $0xb8] sm:$0xff]
    %v68 = vld [vmem:[#allocation5 + $0xc0] sm:$0xff]
    %v69 = vld [vmem:[#allocation5 + $0xc8] sm:$0xff]
    %v70 = vld [vmem:[#allocation5 + $0xd0] sm:$0xff]
    %v71 = vld [vmem:[#allocation5 + $0xd8] sm:$0xff]
    %v72 = vld [vmem:[#allocation5 + $0xe0] sm:$0xff]
    %v73 = vld [vmem:[#allocation5 + $0xe8] sm:$0xff]
    %v74 = vld [vmem:[#allocation5 + $0xf0] sm:$0xff]
    %v75 = vld [vmem:[#allocation5 + $0xf8] sm:$0xff]
    %v76 = vld [vmem:[#allocation5 + $0x100] sm:$0xff]
    %v77 = vld [vmem:[#allocation5 + $0x108] sm:$0xff]
    %v78 = vld [vmem:[#allocation5 + $0x110] sm:$0xff]
    %v79 = vld [vmem:[#allocation5 + $0x118] sm:$0xff]
    %v80 = vld [vmem:[#allocation5 + $0x120] sm:$0xff]
    %v81 = vld [vmem:[#allocation5 + $0x128] sm:$0xff]
    %v82 = vld [vmem:[#allocation5 + $0x130] sm:$0xff]
    %v83 = vld [vmem:[#allocation5 + $0x138] sm:$0xff]
    %v84 = vld [vmem:[#allocation5 + $0x140] sm:$0xff]
    %v85 = vld [vmem:[#allocation5 + $0x148] sm:$0xff]
    %v86 = vld [vmem:[#allocation5 + $0x150] sm:$0xff]
    %v87 = vld [vmem:[#allocation5 + $0x158] sm:$0xff]
    %v88 = vld [vmem:[#allocation5 + $0x160] sm:$0xff]
    %v89 = vld [vmem:[#allocation5 + $0x168] sm:$0xff]
    %v90 = vld [vmem:[#allocation5 + $0x170] sm:$0xff]
    %v91 = vld [vmem:[#allocation5 + $0x178] sm:$0xff]
    %v92 = vld [vmem:[#allocation5 + $0x180] sm:$0xff]
    %v93 = vld [vmem:[#allocation5 + $0x188] sm:$0xff]
    %v94 = vld [vmem:[#allocation5 + $0x190] sm:$0xff]
    %v95 = vld [vmem:[#allocation5 + $0x198] sm:$0xff]
    %v96 = vld [vmem:[#allocation5 + $0x1a0] sm:$0xff]
    %v97 = vld [vmem:[#allocation5 + $0x1a8] sm:$0xff]
    %v98 = vld [vmem:[#allocation5 + $0x1b0] sm:$0xff]
    %v99 = vld [vmem:[#allocation5 + $0x1b8] sm:$0xff]
    %v100 = vld [vmem:[#allocation5 + $0x1c0] sm:$0xff]
    %v101 = vld [vmem:[#allocation5 + $0x1c8] sm:$0xff]
    %v102 = vld [vmem:[#allocation5 + $0x1d0] sm:$0xff]
    %v103 = vld [vmem:[#allocation5 + $0x1d8] sm:$0xff]
    %v104 = vld [vmem:[#allocation5 + $0x1e0] sm:$0xff]
    %v105 = vld [vmem:[#allocation5 + $0x1e8] sm:$0xff]
    %v106 = vld [vmem:[#allocation5 + $0x1f0] sm:$0xff]
    %v107 = vld [vmem:[#allocation5 + $0x1f8] sm:$0xff]
    %v108 = vld [vmem:[#allocation5 + $0x200] sm:$0xff]
    %v109 = vld [vmem:[#allocation5 + $0x208] sm:$0xff]
    %v110 = vld [vmem:[#allocation5 + $0x210] sm:$0xff]
    %v111 = vld [vmem:[#allocation5 + $0x218] sm:$0xff]
    %v112 = vld [vmem:[#allocation5 + $0x220] sm:$0xff]
    %v113 = vld [vmem:[#allocation5 + $0x228] sm:$0xff]
    %v114 = vld [vmem:[#allocation5 + $0x230] sm:$0xff]
    %v115 = vld [vmem:[#allocation5 + $0x238] sm:$0xff]
    %v116 = vld [vmem:[#allocation5 + $0x240] sm:$0xff]
    %v117 = vld [vmem:[#allocation5 + $0x248] sm:$0xff]
    %v118 = vld [vmem:[#allocation5 + $0x250] sm:$0xff]
    %v119 = vld [vmem:[#allocation5 + $0x258] sm:$0xff]
    %v120 = vld [vmem:[#allocation5 + $0x260] sm:$0xff]
    %v121 = vld [vmem:[#allocation5 + $0x268] sm:$0xff]
    %v122 = vld [vmem:[#allocation5 + $0x270] sm:$0xff]
    %v123 = vld [vmem:[#allocation5 + $0x278] sm:$0xff]
    %v124 = vld [vmem:[#allocation5 + $0x280] sm:$0xff]
    %v125 = vld [vmem:[#allocation5 + $0x288] sm:$0xff]
    %v126 = vld [vmem:[#allocation5 + $0x290] sm:$0xff]
    %v127 = vld [vmem:[#allocation5 + $0x298] sm:$0xff]
    %v128 = vld [vmem:[#allocation5 + $0x2a0] sm:$0xff]
    %v129 = vld [vmem:[#allocation5 + $0x2a8] sm:$0xff]
    %v130 = vld [vmem:[#allocation5 + $0x2b0] sm:$0xff]
    %v131 = vld [vmem:[#allocation5 + $0x2b8] sm:$0xff]
    %v132 = vld [vmem:[#allocation5 + $0x2c0] sm:$0xff]
    %v133 = vld [vmem:[#allocation5 + $0x2c8] sm:$0xff]
    %v134 = vld [vmem:[#allocation5 + $0x2d0] sm:$0xff]
    %v135 = vld [vmem:[#allocation5 + $0x2d8] sm:$0xff]
    %v136 = vld [vmem:[#allocation5 + $0x2e0] sm:$0xff]
    %v137 = vld [vmem:[#allocation5 + $0x2e8] sm:$0xff]
    %v138 = vld [vmem:[#allocation5 + $0x2f0] sm:$0xff]
    %v139 = vld [vmem:[#allocation5 + $0x2f8] sm:$0xff]
    %v140 = vld [vmem:[#allocation5 + $0x300] sm:$0xff]
    %v141 = vld [vmem:[#allocation5 + $0x308] sm:$0xff]
    %v142 = vld [vmem:[#allocation5 + $0x310] sm:$0xff]
    %v143 = vld [vmem:[#allocation5 + $0x318] sm:$0xff]
    %v144 = vld [vmem:[#allocation5 + $0x320] sm:$0xff]
    %v145 = vld [vmem:[#allocation5 + $0x328] sm:$0xff]
    %v146 = vld [vmem:[#allocation5 + $0x330] sm:$0xff]
    %v147 = vld [vmem:[#allocation5 + $0x338] sm:$0xff]
    %v148 = vld [vmem:[#allocation5 + $0x340] sm:$0xff]
    %v149 = vld [vmem:[#allocation5 + $0x348] sm:$0xff]
    %v150 = vld [vmem:[#allocation5 + $0x350] sm:$0xff]
    %v151 = vld [vmem:[#allocation5 + $0x358] sm:$0xff]
    %v152 = vld [vmem:[#allocation5 + $0x360] sm:$0xff]
    %v153 = vld [vmem:[#allocation5 + $0x368] sm:$0xff]
    %v154 = vld [vmem:[#allocation5 + $0x370] sm:$0xff]
    %v155 = vld [vmem:[#allocation5 + $0x378] sm:$0xff]
    %v156 = vld [vmem:[#allocation5 + $0x380] sm:$0xff]
    %v157 = vld [vmem:[#allocation5 + $0x388] sm:$0xff]
    %v158 = vld [vmem:[#allocation5 + $0x390] sm:$0xff]
    %v159 = vld [vmem:[#allocation5 + $0x398] sm:$0xff]
    %v160 = vld [vmem:[#allocation5 + $0x3a0] sm:$0xff]
    %v161 = vld [vmem:[#allocation5 + $0x3a8] sm:$0xff]
    %v162 = vld [vmem:[#allocation5 + $0x3b0] sm:$0xff]
    %v163 = vld [vmem:[#allocation5 + $0x3b8] sm:$0xff]
    %v164 = vld [vmem:[#allocation5 + $0x3c0] sm:$0xff]
    %v165 = vld [vmem:[#allocation5 + $0x3c8] sm:$0xff]
    %v166 = vld [vmem:[#allocation5 + $0x3d0] sm:$0xff]
    %v167 = vld [vmem:[#allocation5 + $0x3d8] sm:$0xff]
    %v168 = vld [vmem:[#allocation5 + $0x3e0] sm:$0xff]
    %v169 = vld [vmem:[#allocation5 + $0x3e8] sm:$0xff]
    %v170 = vld [vmem:[#allocation5 + $0x3f0] sm:$0xff]
    %v171 = vld [vmem:[#allocation5 + $0x3f8] sm:$0xff]
    %v172 = vld [vmem:[#allocation5 + $0x400] sm:$0xff]
    %v173 = vld [vmem:[#allocation5 + $0x408] sm:$0xff]
    %v174 = vld [vmem:[#allocation5 + $0x410] sm:$0xff]
    %v175 = vld [vmem:[#allocation5 + $0x418] sm:$0xff]
    %v176 = vld [vmem:[#allocation5 + $0x420] sm:$0xff]
    %v177 = vld [vmem:[#allocation5 + $0x428] sm:$0xff]
    %v178 = vld [vmem:[#allocation5 + $0x430] sm:$0xff]
    %v179 = vld [vmem:[#allocation5 + $0x438] sm:$0xff]
    %v180 = vld [vmem:[#allocation5 + $0x440] sm:$0xff]
    %v181 = vld [vmem:[#allocation5 + $0x448] sm:$0xff]
    %v182 = vld [vmem:[#allocation5 + $0x450] sm:$0xff]
    %v183 = vld [vmem:[#allocation5 + $0x458] sm:$0xff]
    %v184 = vld [vmem:[#allocation5 + $0x460] sm:$0xff]
    %v185 = vld [vmem:[#allocation5 + $0x468] sm:$0xff]
    %v186 = vld [vmem:[#allocation5 + $0x470] sm:$0xff]
    %v187 = vld [vmem:[#allocation5 + $0x478] sm:$0xff]
    %v188 = vld [vmem:[#allocation5 + $0x480] sm:$0xff]
    %v189 = vld [vmem:[#allocation5 + $0x488] sm:$0xff]
    %v190 = vld [vmem:[#allocation5 + $0x490] sm:$0xff]
    %v191 = vld [vmem:[#allocation5 + $0x498] sm:$0xff]
    %v192 = vld [vmem:[#allocation5 + $0x4a0] sm:$0xff]
    %v193 = vld [vmem:[#allocation5 + $0x4a8] sm:$0xff]
    %v194 = vld [vmem:[#allocation5 + $0x4b0] sm:$0xff]
    %v195 = vld [vmem:[#allocation5 + $0x4b8] sm:$0xff]
    %v196 = vld [vmem:[#allocation5 + $0x4c0] sm:$0xff]
    %v197 = vld [vmem:[#allocation5 + $0x4c8] sm:$0xff]
    %v198 = vld [vmem:[#allocation5 + $0x4d0] sm:$0xff]
    %v199 = vld [vmem:[#allocation5 + $0x4d8] sm:$0xff]
    %v200 = vld [vmem:[#allocation5 + $0x4e0] sm:$0xff]
    %v201 = vld [vmem:[#allocation5 + $0x4e8] sm:$0xff]
    %v202 = vld [vmem:[#allocation5 + $0x4f0] sm:$0xff]
    %v203 = vld [vmem:[#allocation5 + $0x4f8] sm:$0xff]
    %v204 = vld [vmem:[#allocation5 + $0x500] sm:$0xff]
    %v205 = vld [vmem:[#allocation5 + $0x508] sm:$0xff]
    %v206 = vld [vmem:[#allocation5 + $0x510] sm:$0xff]
    %v207 = vld [vmem:[#allocation5 + $0x518] sm:$0xff]
    %v208 = vld [vmem:[#allocation5 + $0x520] sm:$0xff]
    %v209 = vld [vmem:[#allocation5 + $0x528] sm:$0xff]
    %v210 = vld [vmem:[#allocation5 + $0x530] sm:$0xff]
    %v211 = vld [vmem:[#allocation5 + $0x538] sm:$0xff]
    %v212 = vld [vmem:[#allocation5 + $0x540] sm:$0xff]
    %v213 = vld [vmem:[#allocation5 + $0x548] sm:$0xff]
    %v214 = vld [vmem:[#allocation5 + $0x550] sm:$0xff]
    %v215 = vld [vmem:[#allocation5 + $0x558] sm:$0xff]
    %v216 = vld [vmem:[#allocation5 + $0x560] sm:$0xff]
    %v217 = vld [vmem:[#allocation5 + $0x568] sm:$0xff]
    %v218 = vld [vmem:[#allocation5 + $0x570] sm:$0xff]
    %v219 = vld [vmem:[#allocation5 + $0x578] sm:$0xff]
    %v220 = vld [vmem:[#allocation5 + $0x580] sm:$0xff]
    %v221 = vld [vmem:[#allocation5 + $0x588] sm:$0xff]
    %v222 = vld [vmem:[#allocation5 + $0x590] sm:$0xff]
    %v223 = vld [vmem:[#allocation5 + $0x598] sm:$0xff]
    %v224 = vld [vmem:[#allocation5 + $0x5a0] sm:$0xff]
    %v225 = vld [vmem:[#allocation5 + $0x5a8] sm:$0xff]
    %v226 = vld [vmem:[#allocation5 + $0x5b0] sm:$0xff]
    %v227 = vld [vmem:[#allocation5 + $0x5b8] sm:$0xff]
    %v228 = vld [vmem:[#allocation5 + $0x5c0] sm:$0xff]
    %v229 = vld [vmem:[#allocation5 + $0x5c8] sm:$0xff]
    %v230 = vld [vmem:[#allocation5 + $0x5d0] sm:$0xff]
    %v231 = vld [vmem:[#allocation5 + $0x5d8] sm:$0xff]
    %v232 = vld [vmem:[#allocation5 + $0x5e0] sm:$0xff]
    %v233 = vld [vmem:[#allocation5 + $0x5e8] sm:$0xff]
    %v234 = vld [vmem:[#allocation5 + $0x5f0] sm:$0xff]
    %v235 = vld [vmem:[#allocation5 + $0x5f8] sm:$0xff]
    %v236 = vld [vmem:[#allocation5 + $0x600] sm:$0xff]
    %v237 = vld [vmem:[#allocation5 + $0x608] sm:$0xff]
    %v238 = vld [vmem:[#allocation5 + $0x610] sm:$0xff]
    %v239 = vld [vmem:[#allocation5 + $0x618] sm:$0xff]
    %v240 = vld [vmem:[#allocation5 + $0x620] sm:$0xff]
    %v241 = vld [vmem:[#allocation5 + $0x628] sm:$0xff]
    %v242 = vld [vmem:[#allocation5 + $0x630] sm:$0xff]
    %v243 = vld [vmem:[#allocation5 + $0x638] sm:$0xff]
    %v244 = vld [vmem:[#allocation5 + $0x640] sm:$0xff]
    %v245 = vld [vmem:[#allocation5 + $0x648] sm:$0xff]
    %v246 = vld [vmem:[#allocation5 + $0x650] sm:$0xff]
    %v247 = vld [vmem:[#allocation5 + $0x658] sm:$0xff]
    %v248 = vld [vmem:[#allocation5 + $0x660] sm:$0xff]
    %v249 = vld [vmem:[#allocation5 + $0x668] sm:$0xff]
    %v250 = vld [vmem:[#allocation5 + $0x670] sm:$0xff]
    %v251 = vld [vmem:[#allocation5 + $0x678] sm:$0xff]
    %v252 = vld [vmem:[#allocation5 + $0x680] sm:$0xff]
    %v253 = vld [vmem:[#allocation5 + $0x688] sm:$0xff]
    %v254 = vld [vmem:[#allocation5 + $0x690] sm:$0xff]
    %v255 = vld [vmem:[#allocation5 + $0x698] sm:$0xff]
    %v256 = vld [vmem:[#allocation5 + $0x6a0] sm:$0xff]
    %v257 = vld [vmem:[#allocation5 + $0x6a8] sm:$0xff]
    %v258 = vld [vmem:[#allocation5 + $0x6b0] sm:$0xff]
    %v259 = vld [vmem:[#allocation5 + $0x6b8] sm:$0xff]
    %v260 = vld [vmem:[%s2] sm:$0x1]
    %v264 = vlaneseq
    %v265 = vshrl.u32 %v264, 7
    %v266 = vsub.s32 0, %v265
    %v267 = vrot.slane %v41, %v266
    %v268 = vlaneseq
    %v269 = vshrl.u32 %v268, 7
    %v270 = vsub.s32 1, %v269
    %v271 = vrot.slane %v41, %v270
    %v272 = vlaneseq
    %v273 = vshrl.u32 %v272, 7
    %v274 = vsub.s32 2, %v273
    %v275 = vrot.slane %v41, %v274
    %v276 = vlaneseq
    %v277 = vshrl.u32 %v276, 7
    %v278 = vsub.s32 3, %v277
    %v279 = vrot.slane %v41, %v278
    %v280 = vlaneseq
    %v281 = vshrl.u32 %v280, 7
    %v282 = vsub.s32 4, %v281
    %v283 = vrot.slane %v41, %v282
    %v284 = vlaneseq
    %v285 = vshrl.u32 %v284, 7
    %v286 = vsub.s32 5, %v285
    %v287 = vrot.slane %v41, %v286
    %v288 = vlaneseq
    %v289 = vshrl.u32 %v288, 7
    %v290 = vsub.s32 6, %v289
    %v291 = vrot.slane %v41, %v290
    %v292 = vlaneseq
    %v293 = vshrl.u32 %v292, 7
    %v294 = vsub.s32 7, %v293
    %v295 = vrot.slane %v41, %v294
    %v296 = vlaneseq
    %v297 = vshrl.u32 %v296, 7
    %v298 = vsub.s32 0, %v297
    %v299 = vrot.slane %v42, %v298
    %v300 = vlaneseq
    %v301 = vshrl.u32 %v300, 7
    %v302 = vsub.s32 1, %v301
    %v303 = vrot.slane %v42, %v302
    %v304 = vlaneseq
    %v305 = vshrl.u32 %v304, 7
    %v306 = vsub.s32 2, %v305
    %v307 = vrot.slane %v42, %v306
    %v308 = vlaneseq
    %v309 = vshrl.u32 %v308, 7
    %v310 = vsub.s32 3, %v309
    %v311 = vrot.slane %v42, %v310
    %v312 = vlaneseq
    %v313 = vshrl.u32 %v312, 7
    %v314 = vsub.s32 4, %v313
    %v315 = vrot.slane %v42, %v314
    %v316 = vlaneseq
    %v317 = vshrl.u32 %v316, 7
    %v318 = vsub.s32 5, %v317
    %v319 = vrot.slane %v42, %v318
    %v320 = vlaneseq
    %v321 = vshrl.u32 %v320, 7
    %v322 = vsub.s32 6, %v321
    %v323 = vrot.slane %v42, %v322
    %v324 = vlaneseq
    %v325 = vshrl.u32 %v324, 7
    %v326 = vsub.s32 7, %v325
    %v327 = vrot.slane %v42, %v326
    %v328 = vlaneseq
    %v329 = vshrl.u32 %v328, 7
    %v330 = vsub.s32 0, %v329
    %v331 = vrot.slane %v43, %v330
    %v332 = vlaneseq
    %v333 = vshrl.u32 %v332, 7
    %v334 = vsub.s32 1, %v333
    %v335 = vrot.slane %v43, %v334
    %354 = vmatprep.subr.mxu0 0.0
    %355 = vmatpush1.xpose.msra.mxu0 0.0
    %356 = vmatprep.subr.mxu0 0.0
    %357 = vmatpush1.xpose.msra.mxu0 0.0
    %358 = vmatprep.subr.mxu0 0.0
    %359 = vmatpush1.xpose.msra.mxu0 0.0
    %360 = vmatprep.subr.mxu0 0.0
    %361 = vmatpush1.xpose.msra.mxu0 0.0
    %362 = vmatprep.subr.mxu0 %v243
    %363 = vmatpush1.xpose.msra.mxu0 %v242
    %364 = vmatprep.subr.mxu0 %v225
    %365 = vmatpush1.xpose.msra.mxu0 %v224
    %366 = vmatprep.subr.mxu0 %v207
    %367 = vmatpush1.xpose.msra.mxu0 %v206
    %368 = vmatprep.subr.mxu0 %v189
    %369 = vmatpush1.xpose.msra.mxu0 %v188
    %370 = vmatprep.subr.mxu0 %v171
    %371 = vmatpush1.xpose.msra.mxu0 %v170
    %372 = vmatprep.subr.mxu0 %v153
    %373 = vmatpush1.xpose.msra.mxu0 %v152
    %374 = vmatprep.subr.mxu0 %v135
    %375 = vmatpush1.xpose.msra.mxu0 %v134
    %376 = vmatprep.subr.mxu0 %v117
    %377 = vmatpush1.xpose.msra.mxu0 %v116
    %378 = vmatprep.subr.mxu0 %v99
    %379 = vmatpush1.xpose.msra.mxu0 %v98
    %380 = vmatprep.subr.mxu0 %v81
    %381 = vmatpush1.xpose.msra.mxu0 %v80
    %382 = vmatprep.subr.mxu0 %v63
    %383 = vmatpush1.xpose.msra.mxu0 %v62
    %384 = vmatprep.subr.mxu0 %v45
    %385 = vmatpush1.xpose.msra.mxu0 %v44
    %386 = vmatprep.subr.mxu0 0.0
    %387 = vmatpush2.xpose.msra.mxu0 0.0
    %388 = vmatprep.subr.mxu0 0.0
    %389 = vmatpush2.xpose.msra.mxu0 0.0
    %390 = vmatprep.subr.mxu0 0.0
    %391 = vmatpush2.xpose.msra.mxu0 0.0
    %392 = vmatprep.subr.mxu0 0.0
    %393 = vmatpush2.xpose.msra.mxu0 0.0
    %394 = vmatprep.subr.mxu0 0.0
    %395 = vmatpush2.xpose.msra.mxu0 0.0
    %396 = vmatprep.subr.mxu0 0.0
    %397 = vmatpush2.xpose.msra.mxu0 0.0
    %398 = vmatprep.subr.mxu0 0.0
    %399 = vmatpush2.xpose.msra.mxu0 0.0
    %400 = vmatprep.subr.mxu0 0.0
    %401 = vmatpush2.xpose.msra.mxu0 0.0
    %402 = vmatprep.subr.mxu0 0.0
    %403 = vmatpush2.xpose.msra.mxu0 0.0
    %404 = vmatprep.subr.mxu0 0.0
    %405 = vmatpush2.xpose.msra.mxu0 0.0
    %406 = vmatprep.subr.mxu0 0.0
    %407 = vmatpush2.xpose.msra.mxu0 0.0
    %408 = vmatprep.subr.mxu0 0.0
    %409 = vmatpush2.xpose.msra.mxu0 0.0
    %410 = vmatprep.subr.mxu0 0.0
    %411 = vmatpush2.xpose.msra.mxu0 0.0
    %412 = vmatprep.subr.mxu0 0.0
    %413 = vmatpush2.xpose.msra.mxu0 0.0
    %414 = vmatprep.subr.mxu0 0.0
    %415 = vmatpush2.xpose.msra.mxu0 0.0
    %416 = vmatprep.subr.mxu0 0.0
    %417 = vmatpush2.xpose.msra.mxu0 0.0
    %418 = vmatprep.mubr.f32.mxu0 %v271
    %419 = vmatmul.mubr.f32.gmra.mxu0 %v267
    %v420 = vpop.f32.mrf.mxu0
    %v421 = vadd.f32 %v260, %v420
    %v422 = vpop.f32.mrf.mxu0
    %423 = vdwg.mxu0
    %424 = vmatprep.subr.mxu0 0.0
    %425 = vmatpush1.xpose.msra.mxu0 0.0
    %426 = vmatprep.subr.mxu0 0.0
    %427 = vmatpush1.xpose.msra.mxu0 0.0
    %428 = vmatprep.subr.mxu0 0.0
    %429 = vmatpush1.xpose.msra.mxu0 0.0
    %430 = vmatprep.subr.mxu0 0.0
    %431 = vmatpush1.xpose.msra.mxu0 0.0
    %432 = vmatprep.subr.mxu0 %v245
    %433 = vmatpush1.xpose.msra.mxu0 %v244
    %434 = vmatprep.subr.mxu0 %v227
    %435 = vmatpush1.xpose.msra.mxu0 %v226
    %436 = vmatprep.subr.mxu0 %v209
    %437 = vmatpush1.xpose.msra.mxu0 %v208
    %438 = vmatprep.subr.mxu0 %v191
    %439 = vmatpush1.xpose.msra.mxu0 %v190
    %440 = vmatprep.subr.mxu0 %v173
    %441 = vmatpush1.xpose.msra.mxu0 %v172
    %442 = vmatprep.subr.mxu0 %v155
    %443 = vmatpush1.xpose.msra.mxu0 %v154
    %444 = vmatprep.subr.mxu0 %v137
    %445 = vmatpush1.xpose.msra.mxu0 %v136
    %446 = vmatprep.subr.mxu0 %v119
    %447 = vmatpush1.xpose.msra.mxu0 %v118
    %448 = vmatprep.subr.mxu0 %v101
    %449 = vmatpush1.xpose.msra.mxu0 %v100
    %450 = vmatprep.subr.mxu0 %v83
    %451 = vmatpush1.xpose.msra.mxu0 %v82
    %452 = vmatprep.subr.mxu0 %v65
    %453 = vmatpush1.xpose.msra.mxu0 %v64
    %454 = vmatprep.subr.mxu0 %v47
    %455 = vmatpush1.xpose.msra.mxu0 %v46
    %456 = vmatprep.subr.mxu0 0.0
    %457 = vmatpush2.xpose.msra.mxu0 0.0
    %458 = vmatprep.subr.mxu0 0.0
    %459 = vmatpush2.xpose.msra.mxu0 0.0
    %460 = vmatprep.subr.mxu0 0.0
    %461 = vmatpush2.xpose.msra.mxu0 0.0
    %462 = vmatprep.subr.mxu0 0.0
    %463 = vmatpush2.xpose.msra.mxu0 0.0
    %464 = vmatprep.subr.mxu0 0.0
    %465 = vmatpush2.xpose.msra.mxu0 0.0
    %466 = vmatprep.subr.mxu0 0.0
    %467 = vmatpush2.xpose.msra.mxu0 0.0
    %468 = vmatprep.subr.mxu0 0.0
    %469 = vmatpush2.xpose.msra.mxu0 0.0
    %470 = vmatprep.subr.mxu0 0.0
    %471 = vmatpush2.xpose.msra.mxu0 0.0
    %472 = vmatprep.subr.mxu0 0.0
    %473 = vmatpush2.xpose.msra.mxu0 0.0
    %474 = vmatprep.subr.mxu0 0.0
    %475 = vmatpush2.xpose.msra.mxu0 0.0
    %476 = vmatprep.subr.mxu0 0.0
    %477 = vmatpush2.xpose.msra.mxu0 0.0
    %478 = vmatprep.subr.mxu0 0.0
    %479 = vmatpush2.xpose.msra.mxu0 0.0
    %480 = vmatprep.subr.mxu0 0.0
    %481 = vmatpush2.xpose.msra.mxu0 0.0
    %482 = vmatprep.subr.mxu0 0.0
    %483 = vmatpush2.xpose.msra.mxu0 0.0
    %484 = vmatprep.subr.mxu0 0.0
    %485 = vmatpush2.xpose.msra.mxu0 0.0
    %486 = vmatprep.subr.mxu0 0.0
    %487 = vmatpush2.xpose.msra.mxu0 0.0
    %488 = vmatprep.mubr.f32.mxu0 %v279
    %489 = vmatmul.mubr.f32.gmra.mxu0 %v275
    %v490 = vpop.f32.mrf.mxu0
    %v491 = vadd.f32 %v421, %v490
    %v492 = vpop.f32.mrf.mxu0
    %493 = vdwg.mxu0
    %494 = vmatprep.subr.mxu0 0.0
    %495 = vmatpush1.xpose.msra.mxu0 0.0
    %496 = vmatprep.subr.mxu0 0.0
    %497 = vmatpush1.xpose.msra.mxu0 0.0
    %498 = vmatprep.subr.mxu0 0.0
    %499 = vmatpush1.xpose.msra.mxu0 0.0
    %500 = vmatprep.subr.mxu0 0.0
    %501 = vmatpush1.xpose.msra.mxu0 0.0
    %502 = vmatprep.subr.mxu0 %v247
    %503 = vmatpush1.xpose.msra.mxu0 %v246
    %504 = vmatprep.subr.mxu0 %v229
    %505 = vmatpush1.xpose.msra.mxu0 %v228
    %506 = vmatprep.subr.mxu0 %v211
    %507 = vmatpush1.xpose.msra.mxu0 %v210
    %508 = vmatprep.subr.mxu0 %v193
    %509 = vmatpush1.xpose.msra.mxu0 %v192
    %510 = vmatprep.subr.mxu0 %v175
    %511 = vmatpush1.xpose.msra.mxu0 %v174
    %512 = vmatprep.subr.mxu0 %v157
    %513 = vmatpush1.xpose.msra.mxu0 %v156
    %514 = vmatprep.subr.mxu0 %v139
    %515 = vmatpush1.xpose.msra.mxu0 %v138
    %516 = vmatprep.subr.mxu0 %v121
    %517 = vmatpush1.xpose.msra.mxu0 %v120
    %518 = vmatprep.subr.mxu0 %v103
    %519 = vmatpush1.xpose.msra.mxu0 %v102
    %520 = vmatprep.subr.mxu0 %v85
    %521 = vmatpush1.xpose.msra.mxu0 %v84
    %522 = vmatprep.subr.mxu0 %v67
    %523 = vmatpush1.xpose.msra.mxu0 %v66
    %524 = vmatprep.subr.mxu0 %v49
    %525 = vmatpush1.xpose.msra.mxu0 %v48
    %526 = vmatprep.subr.mxu0 0.0
    %527 = vmatpush2.xpose.msra.mxu0 0.0
    %528 = vmatprep.subr.mxu0 0.0
    %529 = vmatpush2.xpose.msra.mxu0 0.0
    %530 = vmatprep.subr.mxu0 0.0
    %531 = vmatpush2.xpose.msra.mxu0 0.0
    %532 = vmatprep.subr.mxu0 0.0
    %533 = vmatpush2.xpose.msra.mxu0 0.0
    %534 = vmatprep.subr.mxu0 0.0
    %535 = vmatpush2.xpose.msra.mxu0 0.0
    %536 = vmatprep.subr.mxu0 0.0
    %537 = vmatpush2.xpose.msra.mxu0 0.0
    %538 = vmatprep.subr.mxu0 0.0
    %539 = vmatpush2.xpose.msra.mxu0 0.0
    %540 = vmatprep.subr.mxu0 0.0
    %541 = vmatpush2.xpose.msra.mxu0 0.0
    %542 = vmatprep.subr.mxu0 0.0
    %543 = vmatpush2.xpose.msra.mxu0 0.0
    %544 = vmatprep.subr.mxu0 0.0
    %545 = vmatpush2.xpose.msra.mxu0 0.0
    %546 = vmatprep.subr.mxu0 0.0
    %547 = vmatpush2.xpose.msra.mxu0 0.0
    %548 = vmatprep.subr.mxu0 0.0
    %549 = vmatpush2.xpose.msra.mxu0 0.0
    %550 = vmatprep.subr.mxu0 0.0
    %551 = vmatpush2.xpose.msra.mxu0 0.0
    %552 = vmatprep.subr.mxu0 0.0
    %553 = vmatpush2.xpose.msra.mxu0 0.0
    %554 = vmatprep.subr.mxu0 0.0
    %555 = vmatpush2.xpose.msra.mxu0 0.0
    %556 = vmatprep.subr.mxu0 0.0
    %557 = vmatpush2.xpose.msra.mxu0 0.0
    %558 = vmatprep.mubr.f32.mxu0 %v287
    %559 = vmatmul.mubr.f32.gmra.mxu0 %v283
    %v560 = vpop.f32.mrf.mxu0
    %v561 = vadd.f32 %v491, %v560
    %v562 = vpop.f32.mrf.mxu0
    %563 = vdwg.mxu0
    %564 = vmatprep.subr.mxu0 0.0
    %565 = vmatpush1.xpose.msra.mxu0 0.0
    %566 = vmatprep.subr.mxu0 0.0
    %567 = vmatpush1.xpose.msra.mxu0 0.0
    %568 = vmatprep.subr.mxu0 0.0
    %569 = vmatpush1.xpose.msra.mxu0 0.0
    %570 = vmatprep.subr.mxu0 0.0
    %571 = vmatpush1.xpose.msra.mxu0 0.0
    %572 = vmatprep.subr.mxu0 %v249
    %573 = vmatpush1.xpose.msra.mxu0 %v248
    %574 = vmatprep.subr.mxu0 %v231
    %575 = vmatpush1.xpose.msra.mxu0 %v230
    %576 = vmatprep.subr.mxu0 %v213
    %577 = vmatpush1.xpose.msra.mxu0 %v212
    %578 = vmatprep.subr.mxu0 %v195
    %579 = vmatpush1.xpose.msra.mxu0 %v194
    %580 = vmatprep.subr.mxu0 %v177
    %581 = vmatpush1.xpose.msra.mxu0 %v176
    %582 = vmatprep.subr.mxu0 %v159
    %583 = vmatpush1.xpose.msra.mxu0 %v158
    %584 = vmatprep.subr.mxu0 %v141
    %585 = vmatpush1.xpose.msra.mxu0 %v140
    %586 = vmatprep.subr.mxu0 %v123
    %587 = vmatpush1.xpose.msra.mxu0 %v122
    %588 = vmatprep.subr.mxu0 %v105
    %589 = vmatpush1.xpose.msra.mxu0 %v104
    %590 = vmatprep.subr.mxu0 %v87
    %591 = vmatpush1.xpose.msra.mxu0 %v86
    %592 = vmatprep.subr.mxu0 %v69
    %593 = vmatpush1.xpose.msra.mxu0 %v68
    %594 = vmatprep.subr.mxu0 %v51
    %595 = vmatpush1.xpose.msra.mxu0 %v50
    %596 = vmatprep.subr.mxu0 0.0
    %597 = vmatpush2.xpose.msra.mxu0 0.0
    %598 = vmatprep.subr.mxu0 0.0
    %599 = vmatpush2.xpose.msra.mxu0 0.0
    %600 = vmatprep.subr.mxu0 0.0
    %601 = vmatpush2.xpose.msra.mxu0 0.0
    %602 = vmatprep.subr.mxu0 0.0
    %603 = vmatpush2.xpose.msra.mxu0 0.0
    %604 = vmatprep.subr.mxu0 0.0
    %605 = vmatpush2.xpose.msra.mxu0 0.0
    %606 = vmatprep.subr.mxu0 0.0
    %607 = vmatpush2.xpose.msra.mxu0 0.0
    %608 = vmatprep.subr.mxu0 0.0
    %609 = vmatpush2.xpose.msra.mxu0 0.0
    %610 = vmatprep.subr.mxu0 0.0
    %611 = vmatpush2.xpose.msra.mxu0 0.0
    %612 = vmatprep.subr.mxu0 0.0
    %613 = vmatpush2.xpose.msra.mxu0 0.0
    %614 = vmatprep.subr.mxu0 0.0
    %615 = vmatpush2.xpose.msra.mxu0 0.0
    %616 = vmatprep.subr.mxu0 0.0
    %617 = vmatpush2.xpose.msra.mxu0 0.0
    %618 = vmatprep.subr.mxu0 0.0
    %619 = vmatpush2.xpose.msra.mxu0 0.0
    %620 = vmatprep.subr.mxu0 0.0
    %621 = vmatpush2.xpose.msra.mxu0 0.0
    %622 = vmatprep.subr.mxu0 0.0
    %623 = vmatpush2.xpose.msra.mxu0 0.0
    %624 = vmatprep.subr.mxu0 0.0
    %625 = vmatpush2.xpose.msra.mxu0 0.0
    %626 = vmatprep.subr.mxu0 0.0
    %627 = vmatpush2.xpose.msra.mxu0 0.0
    %628 = vmatprep.mubr.f32.mxu0 %v295
    %629 = vmatmul.mubr.f32.gmra.mxu0 %v291
    %v630 = vpop.f32.mrf.mxu0
    %v631 = vadd.f32 %v561, %v630
    %v632 = vpop.f32.mrf.mxu0
    %633 = vdwg.mxu0
    %634 = vmatprep.subr.mxu0 0.0
    %635 = vmatpush1.xpose.msra.mxu0 0.0
    %636 = vmatprep.subr.mxu0 0.0
    %637 = vmatpush1.xpose.msra.mxu0 0.0
    %638 = vmatprep.subr.mxu0 0.0
    %639 = vmatpush1.xpose.msra.mxu0 0.0
    %640 = vmatprep.subr.mxu0 0.0
    %641 = vmatpush1.xpose.msra.mxu0 0.0
    %642 = vmatprep.subr.mxu0 %v251
    %643 = vmatpush1.xpose.msra.mxu0 %v250
    %644 = vmatprep.subr.mxu0 %v233
    %645 = vmatpush1.xpose.msra.mxu0 %v232
    %646 = vmatprep.subr.mxu0 %v215
    %647 = vmatpush1.xpose.msra.mxu0 %v214
    %648 = vmatprep.subr.mxu0 %v197
    %649 = vmatpush1.xpose.msra.mxu0 %v196
    %650 = vmatprep.subr.mxu0 %v179
    %651 = vmatpush1.xpose.msra.mxu0 %v178
    %652 = vmatprep.subr.mxu0 %v161
    %653 = vmatpush1.xpose.msra.mxu0 %v160
    %654 = vmatprep.subr.mxu0 %v143
    %655 = vmatpush1.xpose.msra.mxu0 %v142
    %656 = vmatprep.subr.mxu0 %v125
    %657 = vmatpush1.xpose.msra.mxu0 %v124
    %658 = vmatprep.subr.mxu0 %v107
    %659 = vmatpush1.xpose.msra.mxu0 %v106
    %660 = vmatprep.subr.mxu0 %v89
    %661 = vmatpush1.xpose.msra.mxu0 %v88
    %662 = vmatprep.subr.mxu0 %v71
    %663 = vmatpush1.xpose.msra.mxu0 %v70
    %664 = vmatprep.subr.mxu0 %v53
    %665 = vmatpush1.xpose.msra.mxu0 %v52
    %666 = vmatprep.subr.mxu0 0.0
    %667 = vmatpush2.xpose.msra.mxu0 0.0
    %668 = vmatprep.subr.mxu0 0.0
    %669 = vmatpush2.xpose.msra.mxu0 0.0
    %670 = vmatprep.subr.mxu0 0.0
    %671 = vmatpush2.xpose.msra.mxu0 0.0
    %672 = vmatprep.subr.mxu0 0.0
    %673 = vmatpush2.xpose.msra.mxu0 0.0
    %674 = vmatprep.subr.mxu0 0.0
    %675 = vmatpush2.xpose.msra.mxu0 0.0
    %676 = vmatprep.subr.mxu0 0.0
    %677 = vmatpush2.xpose.msra.mxu0 0.0
    %678 = vmatprep.subr.mxu0 0.0
    %679 = vmatpush2.xpose.msra.mxu0 0.0
    %680 = vmatprep.subr.mxu0 0.0
    %681 = vmatpush2.xpose.msra.mxu0 0.0
    %682 = vmatprep.subr.mxu0 0.0
    %683 = vmatpush2.xpose.msra.mxu0 0.0
    %684 = vmatprep.subr.mxu0 0.0
    %685 = vmatpush2.xpose.msra.mxu0 0.0
    %686 = vmatprep.subr.mxu0 0.0
    %687 = vmatpush2.xpose.msra.mxu0 0.0
    %688 = vmatprep.subr.mxu0 0.0
    %689 = vmatpush2.xpose.msra.mxu0 0.0
    %690 = vmatprep.subr.mxu0 0.0
    %691 = vmatpush2.xpose.msra.mxu0 0.0
    %692 = vmatprep.subr.mxu0 0.0
    %693 = vmatpush2.xpose.msra.mxu0 0.0
    %694 = vmatprep.subr.mxu0 0.0
    %695 = vmatpush2.xpose.msra.mxu0 0.0
    %696 = vmatprep.subr.mxu0 0.0
    %697 = vmatpush2.xpose.msra.mxu0 0.0
    %698 = vmatprep.mubr.f32.mxu0 %v303
    %699 = vmatmul.mubr.f32.gmra.mxu0 %v299
    %v700 = vpop.f32.mrf.mxu0
    %v701 = vadd.f32 %v631, %v700
    %v702 = vpop.f32.mrf.mxu0
    %703 = vdwg.mxu0
    %704 = vmatprep.subr.mxu0 0.0
    %705 = vmatpush1.xpose.msra.mxu0 0.0
    %706 = vmatprep.subr.mxu0 0.0
    %707 = vmatpush1.xpose.msra.mxu0 0.0
    %708 = vmatprep.subr.mxu0 0.0
    %709 = vmatpush1.xpose.msra.mxu0 0.0
    %710 = vmatprep.subr.mxu0 0.0
    %711 = vmatpush1.xpose.msra.mxu0 0.0
    %712 = vmatprep.subr.mxu0 %v253
    %713 = vmatpush1.xpose.msra.mxu0 %v252
    %714 = vmatprep.subr.mxu0 %v235
    %715 = vmatpush1.xpose.msra.mxu0 %v234
    %716 = vmatprep.subr.mxu0 %v217
    %717 = vmatpush1.xpose.msra.mxu0 %v216
    %718 = vmatprep.subr.mxu0 %v199
    %719 = vmatpush1.xpose.msra.mxu0 %v198
    %720 = vmatprep.subr.mxu0 %v181
    %721 = vmatpush1.xpose.msra.mxu0 %v180
    %722 = vmatprep.subr.mxu0 %v163
    %723 = vmatpush1.xpose.msra.mxu0 %v162
    %724 = vmatprep.subr.mxu0 %v145
    %725 = vmatpush1.xpose.msra.mxu0 %v144
    %726 = vmatprep.subr.mxu0 %v127
    %727 = vmatpush1.xpose.msra.mxu0 %v126
    %728 = vmatprep.subr.mxu0 %v109
    %729 = vmatpush1.xpose.msra.mxu0 %v108
    %730 = vmatprep.subr.mxu0 %v91
    %731 = vmatpush1.xpose.msra.mxu0 %v90
    %732 = vmatprep.subr.mxu0 %v73
    %733 = vmatpush1.xpose.msra.mxu0 %v72
    %734 = vmatprep.subr.mxu0 %v55
    %735 = vmatpush1.xpose.msra.mxu0 %v54
    %736 = vmatprep.subr.mxu0 0.0
    %737 = vmatpush2.xpose.msra.mxu0 0.0
    %738 = vmatprep.subr.mxu0 0.0
    %739 = vmatpush2.xpose.msra.mxu0 0.0
    %740 = vmatprep.subr.mxu0 0.0
    %741 = vmatpush2.xpose.msra.mxu0 0.0
    %742 = vmatprep.subr.mxu0 0.0
    %743 = vmatpush2.xpose.msra.mxu0 0.0
    %744 = vmatprep.subr.mxu0 0.0
    %745 = vmatpush2.xpose.msra.mxu0 0.0
    %746 = vmatprep.subr.mxu0 0.0
    %747 = vmatpush2.xpose.msra.mxu0 0.0
    %748 = vmatprep.subr.mxu0 0.0
    %749 = vmatpush2.xpose.msra.mxu0 0.0
    %750 = vmatprep.subr.mxu0 0.0
    %751 = vmatpush2.xpose.msra.mxu0 0.0
    %752 = vmatprep.subr.mxu0 0.0
    %753 = vmatpush2.xpose.msra.mxu0 0.0
    %754 = vmatprep.subr.mxu0 0.0
    %755 = vmatpush2.xpose.msra.mxu0 0.0
    %756 = vmatprep.subr.mxu0 0.0
    %757 = vmatpush2.xpose.msra.mxu0 0.0
    %758 = vmatprep.subr.mxu0 0.0
    %759 = vmatpush2.xpose.msra.mxu0 0.0
    %760 = vmatprep.subr.mxu0 0.0
    %761 = vmatpush2.xpose.msra.mxu0 0.0
    %762 = vmatprep.subr.mxu0 0.0
    %763 = vmatpush2.xpose.msra.mxu0 0.0
    %764 = vmatprep.subr.mxu0 0.0
    %765 = vmatpush2.xpose.msra.mxu0 0.0
    %766 = vmatprep.subr.mxu0 0.0
    %767 = vmatpush2.xpose.msra.mxu0 0.0
    %768 = vmatprep.mubr.f32.mxu0 %v311
    %769 = vmatmul.mubr.f32.gmra.mxu0 %v307
    %v770 = vpop.f32.mrf.mxu0
    %v771 = vadd.f32 %v701, %v770
    %v772 = vpop.f32.mrf.mxu0
    %773 = vdwg.mxu0
    %774 = vmatprep.subr.mxu0 0.0
    %775 = vmatpush1.xpose.msra.mxu0 0.0
    %776 = vmatprep.subr.mxu0 0.0
    %777 = vmatpush1.xpose.msra.mxu0 0.0
    %778 = vmatprep.subr.mxu0 0.0
    %779 = vmatpush1.xpose.msra.mxu0 0.0
    %780 = vmatprep.subr.mxu0 0.0
    %781 = vmatpush1.xpose.msra.mxu0 0.0
    %782 = vmatprep.subr.mxu0 %v255
    %783 = vmatpush1.xpose.msra.mxu0 %v254
    %784 = vmatprep.subr.mxu0 %v237
    %785 = vmatpush1.xpose.msra.mxu0 %v236
    %786 = vmatprep.subr.mxu0 %v219
    %787 = vmatpush1.xpose.msra.mxu0 %v218
    %788 = vmatprep.subr.mxu0 %v201
    %789 = vmatpush1.xpose.msra.mxu0 %v200
    %790 = vmatprep.subr.mxu0 %v183
    %791 = vmatpush1.xpose.msra.mxu0 %v182
    %792 = vmatprep.subr.mxu0 %v165
    %793 = vmatpush1.xpose.msra.mxu0 %v164
    %794 = vmatprep.subr.mxu0 %v147
    %795 = vmatpush1.xpose.msra.mxu0 %v146
    %796 = vmatprep.subr.mxu0 %v129
    %797 = vmatpush1.xpose.msra.mxu0 %v128
    %798 = vmatprep.subr.mxu0 %v111
    %799 = vmatpush1.xpose.msra.mxu0 %v110
    %800 = vmatprep.subr.mxu0 %v93
    %801 = vmatpush1.xpose.msra.mxu0 %v92
    %802 = vmatprep.subr.mxu0 %v75
    %803 = vmatpush1.xpose.msra.mxu0 %v74
    %804 = vmatprep.subr.mxu0 %v57
    %805 = vmatpush1.xpose.msra.mxu0 %v56
    %806 = vmatprep.subr.mxu0 0.0
    %807 = vmatpush2.xpose.msra.mxu0 0.0
    %808 = vmatprep.subr.mxu0 0.0
    %809 = vmatpush2.xpose.msra.mxu0 0.0
    %810 = vmatprep.subr.mxu0 0.0
    %811 = vmatpush2.xpose.msra.mxu0 0.0
    %812 = vmatprep.subr.mxu0 0.0
    %813 = vmatpush2.xpose.msra.mxu0 0.0
    %814 = vmatprep.subr.mxu0 0.0
    %815 = vmatpush2.xpose.msra.mxu0 0.0
    %816 = vmatprep.subr.mxu0 0.0
    %817 = vmatpush2.xpose.msra.mxu0 0.0
    %818 = vmatprep.subr.mxu0 0.0
    %819 = vmatpush2.xpose.msra.mxu0 0.0
    %820 = vmatprep.subr.mxu0 0.0
    %821 = vmatpush2.xpose.msra.mxu0 0.0
    %822 = vmatprep.subr.mxu0 0.0
    %823 = vmatpush2.xpose.msra.mxu0 0.0
    %824 = vmatprep.subr.mxu0 0.0
    %825 = vmatpush2.xpose.msra.mxu0 0.0
    %826 = vmatprep.subr.mxu0 0.0
    %827 = vmatpush2.xpose.msra.mxu0 0.0
    %828 = vmatprep.subr.mxu0 0.0
    %829 = vmatpush2.xpose.msra.mxu0 0.0
    %830 = vmatprep.subr.mxu0 0.0
    %831 = vmatpush2.xpose.msra.mxu0 0.0
    %832 = vmatprep.subr.mxu0 0.0
    %833 = vmatpush2.xpose.msra.mxu0 0.0
    %834 = vmatprep.subr.mxu0 0.0
    %835 = vmatpush2.xpose.msra.mxu0 0.0
    %836 = vmatprep.subr.mxu0 0.0
    %837 = vmatpush2.xpose.msra.mxu0 0.0
    %838 = vmatprep.mubr.f32.mxu0 %v319
    %839 = vmatmul.mubr.f32.gmra.mxu0 %v315
    %v840 = vpop.f32.mrf.mxu0
    %v841 = vadd.f32 %v771, %v840
    %v842 = vpop.f32.mrf.mxu0
    %843 = vdwg.mxu0
    %844 = vmatprep.subr.mxu0 0.0
    %845 = vmatpush1.xpose.msra.mxu0 0.0
    %846 = vmatprep.subr.mxu0 0.0
    %847 = vmatpush1.xpose.msra.mxu0 0.0
    %848 = vmatprep.subr.mxu0 0.0
    %849 = vmatpush1.xpose.msra.mxu0 0.0
    %850 = vmatprep.subr.mxu0 0.0
    %851 = vmatpush1.xpose.msra.mxu0 0.0
    %852 = vmatprep.subr.mxu0 %v257
    %853 = vmatpush1.xpose.msra.mxu0 %v256
    %854 = vmatprep.subr.mxu0 %v239
    %855 = vmatpush1.xpose.msra.mxu0 %v238
    %856 = vmatprep.subr.mxu0 %v221
    %857 = vmatpush1.xpose.msra.mxu0 %v220
    %858 = vmatprep.subr.mxu0 %v203
    %859 = vmatpush1.xpose.msra.mxu0 %v202
    %860 = vmatprep.subr.mxu0 %v185
    %861 = vmatpush1.xpose.msra.mxu0 %v184
    %862 = vmatprep.subr.mxu0 %v167
    %863 = vmatpush1.xpose.msra.mxu0 %v166
    %864 = vmatprep.subr.mxu0 %v149
    %865 = vmatpush1.xpose.msra.mxu0 %v148
    %866 = vmatprep.subr.mxu0 %v131
    %867 = vmatpush1.xpose.msra.mxu0 %v130
    %868 = vmatprep.subr.mxu0 %v113
    %869 = vmatpush1.xpose.msra.mxu0 %v112
    %870 = vmatprep.subr.mxu0 %v95
    %871 = vmatpush1.xpose.msra.mxu0 %v94
    %872 = vmatprep.subr.mxu0 %v77
    %873 = vmatpush1.xpose.msra.mxu0 %v76
    %874 = vmatprep.subr.mxu0 %v59
    %875 = vmatpush1.xpose.msra.mxu0 %v58
    %876 = vmatprep.subr.mxu0 0.0
    %877 = vmatpush2.xpose.msra.mxu0 0.0
    %878 = vmatprep.subr.mxu0 0.0
    %879 = vmatpush2.xpose.msra.mxu0 0.0
    %880 = vmatprep.subr.mxu0 0.0
    %881 = vmatpush2.xpose.msra.mxu0 0.0
    %882 = vmatprep.subr.mxu0 0.0
    %883 = vmatpush2.xpose.msra.mxu0 0.0
    %884 = vmatprep.subr.mxu0 0.0
    %885 = vmatpush2.xpose.msra.mxu0 0.0
    %886 = vmatprep.subr.mxu0 0.0
    %887 = vmatpush2.xpose.msra.mxu0 0.0
    %888 = vmatprep.subr.mxu0 0.0
    %889 = vmatpush2.xpose.msra.mxu0 0.0
    %890 = vmatprep.subr.mxu0 0.0
    %891 = vmatpush2.xpose.msra.mxu0 0.0
    %892 = vmatprep.subr.mxu0 0.0
    %893 = vmatpush2.xpose.msra.mxu0 0.0
    %894 = vmatprep.subr.mxu0 0.0
    %895 = vmatpush2.xpose.msra.mxu0 0.0
    %896 = vmatprep.subr.mxu0 0.0
    %897 = vmatpush2.xpose.msra.mxu0 0.0
    %898 = vmatprep.subr.mxu0 0.0
    %899 = vmatpush2.xpose.msra.mxu0 0.0
    %900 = vmatprep.subr.mxu0 0.0
    %901 = vmatpush2.xpose.msra.mxu0 0.0
    %902 = vmatprep.subr.mxu0 0.0
    %903 = vmatpush2.xpose.msra.mxu0 0.0
    %904 = vmatprep.subr.mxu0 0.0
    %905 = vmatpush2.xpose.msra.mxu0 0.0
    %906 = vmatprep.subr.mxu0 0.0
    %907 = vmatpush2.xpose.msra.mxu0 0.0
    %908 = vmatprep.mubr.f32.mxu0 %v327
    %909 = vmatmul.mubr.f32.gmra.mxu0 %v323
    %v910 = vpop.f32.mrf.mxu0
    %v911 = vadd.f32 %v841, %v910
    %v912 = vpop.f32.mrf.mxu0
    %913 = vdwg.mxu0
    %914 = vmatprep.subr.mxu0 0.0
    %915 = vmatpush1.xpose.msra.mxu0 0.0
    %916 = vmatprep.subr.mxu0 0.0
    %917 = vmatpush1.xpose.msra.mxu0 0.0
    %918 = vmatprep.subr.mxu0 0.0
    %919 = vmatpush1.xpose.msra.mxu0 0.0
    %920 = vmatprep.subr.mxu0 0.0
    %921 = vmatpush1.xpose.msra.mxu0 0.0
    %922 = vmatprep.subr.mxu0 %v259
    %923 = vmatpush1.xpose.msra.mxu0 %v258
    %924 = vmatprep.subr.mxu0 %v241
    %925 = vmatpush1.xpose.msra.mxu0 %v240
    %926 = vmatprep.subr.mxu0 %v223
    %927 = vmatpush1.xpose.msra.mxu0 %v222
    %928 = vmatprep.subr.mxu0 %v205
    %929 = vmatpush1.xpose.msra.mxu0 %v204
    %930 = vmatprep.subr.mxu0 %v187
    %931 = vmatpush1.xpose.msra.mxu0 %v186
    %932 = vmatprep.subr.mxu0 %v169
    %933 = vmatpush1.xpose.msra.mxu0 %v168
    %934 = vmatprep.subr.mxu0 %v151
    %935 = vmatpush1.xpose.msra.mxu0 %v150
    %936 = vmatprep.subr.mxu0 %v133
    %937 = vmatpush1.xpose.msra.mxu0 %v132
    %938 = vmatprep.subr.mxu0 %v115
    %939 = vmatpush1.xpose.msra.mxu0 %v114
    %940 = vmatprep.subr.mxu0 %v97
    %941 = vmatpush1.xpose.msra.mxu0 %v96
    %942 = vmatprep.subr.mxu0 %v79
    %943 = vmatpush1.xpose.msra.mxu0 %v78
    %944 = vmatprep.subr.mxu0 %v61
    %945 = vmatpush1.xpose.msra.mxu0 %v60
    %946 = vmatprep.subr.mxu0 0.0
    %947 = vmatpush2.xpose.msra.mxu0 0.0
    %948 = vmatprep.subr.mxu0 0.0
    %949 = vmatpush2.xpose.msra.mxu0 0.0
    %950 = vmatprep.subr.mxu0 0.0
    %951 = vmatpush2.xpose.msra.mxu0 0.0
    %952 = vmatprep.subr.mxu0 0.0
    %953 = vmatpush2.xpose.msra.mxu0 0.0
    %954 = vmatprep.subr.mxu0 0.0
    %955 = vmatpush2.xpose.msra.mxu0 0.0
    %956 = vmatprep.subr.mxu0 0.0
    %957 = vmatpush2.xpose.msra.mxu0 0.0
    %958 = vmatprep.subr.mxu0 0.0
    %959 = vmatpush2.xpose.msra.mxu0 0.0
    %960 = vmatprep.subr.mxu0 0.0
    %961 = vmatpush2.xpose.msra.mxu0 0.0
    %962 = vmatprep.subr.mxu0 0.0
    %963 = vmatpush2.xpose.msra.mxu0 0.0
    %964 = vmatprep.subr.mxu0 0.0
    %965 = vmatpush2.xpose.msra.mxu0 0.0
    %966 = vmatprep.subr.mxu0 0.0
    %967 = vmatpush2.xpose.msra.mxu0 0.0
    %968 = vmatprep.subr.mxu0 0.0
    %969 = vmatpush2.xpose.msra.mxu0 0.0
    %970 = vmatprep.subr.mxu0 0.0
    %971 = vmatpush2.xpose.msra.mxu0 0.0
    %972 = vmatprep.subr.mxu0 0.0
    %973 = vmatpush2.xpose.msra.mxu0 0.0
    %974 = vmatprep.subr.mxu0 0.0
    %975 = vmatpush2.xpose.msra.mxu0 0.0
    %976 = vmatprep.subr.mxu0 0.0
    %977 = vmatpush2.xpose.msra.mxu0 0.0
    %978 = vmatprep.mubr.f32.mxu0 %v335
    %979 = vmatmul.mubr.f32.gmra.mxu0 %v331
    %v980 = vpop.f32.mrf.mxu0
    %v981 = vadd.f32 %v911, %v980
    %v982 = vpop.f32.mrf.mxu0
    %983 = vdwg.mxu0
    %vm984 = vcmask 778240
    %985 = vst.msk [vmem:[#allocation7] sm:$0x1] %vm984, %v981
    // Predicated region
    $region22: #{tpu_custom_call.1} parent=1 // pred_check
      _
    $region23: #{tpu_custom_call.1} parent=1 // pred_check_branch
      %987 = sbr.rel (0) target = $region25
    $region24: #{tpu_custom_call.1} parent=1 // pred_region
      %s989 = ssub.s32 16, 16
      %990 = vsyncadd [#allocation4], %s989
      %s992 = sshll.u32 [#allocation7], 4
      %s993 = int_to_ptr.vmem [resolvable:$true] %s992
      %995 = dma.vmem_to_hbm [thread:$0]  %s993, 16, %s3, [#allocation4]
    $region25: #{tpu_custom_call.1} parent=1 // pred_fallthru
      _
    // Predicated region
    $region26: #{tpu_custom_call.1} parent=1 // pred_check
      _
    $region27: #{tpu_custom_call.1} parent=1 // pred_check_branch
      %997 = sbr.rel (0) target = $region29
    $region28: #{tpu_custom_call.1} parent=1 // pred_region
      %998 = dma.done [#allocation4], 16
    $region29: #{tpu_custom_call.1} parent=1 // pred_fallthru
      _
    %999 = vsyncpa [#allocation3], 1
    %1000 = vsyncpa [#allocation6], 1
    %1001 = vsyncpa [#allocation4], 1

</llo_original>
